<compile_context>
chip_gen: v5e
topology: v5e:2x2
jax: 0.10.0
libtpu: 0.0.40
codegen_flags: <defaults>
</compile_context>

<pallas_src>
import jax
import jax.numpy as jnp
from jax.experimental import pallas as pl
from jax.experimental.pallas import tpu as pltpu

# ---- quantization constants (stand-in for the observer-calibrated qconfig) ----
S_IN, ZP_IN = 0.02, 128.0       # input  QuantStub (quint8, per-tensor affine)
S_OUT, ZP_OUT = 0.05, 128.0     # output QuantStub (quint8, per-tensor affine)
INV_S_IN = 1.0 / S_IN           # precomputed reciprocals -> multiply, no vector divide
INV_S_OUT = 1.0 / S_OUT
QMIN, QMAX = 0.0, 255.0

SUBLANE = 8
TARGET_BATCH_TILE = 1024        # mem-bound sweet spot (85-86% of HBM roofline at 512-1024 rows)


def _cdiv(a, b):
    return (a + b - 1) // b


def _round_up(n, m):
    return ((n + m - 1) // m) * m


def _pick_batch_tile(B):
    """Batch tile: multiple of 8, ~TARGET_BATCH_TILE rows, and >= 2 grid steps when B allows
    so v7x's two TensorCores both get work (v5e/v6e single-TC: harmless)."""
    if B <= SUBLANE:
        return B                                   # single block; dim == full array dim is legal
    n_tiles = max(2, _cdiv(B, TARGET_BATCH_TILE))
    tb = _round_up(_cdiv(B, n_tiles), SUBLANE)
    return int(min(tb, _round_up(B, SUBLANE)))


def quant_wrapper_kernel(x_ref, w_ref, b_ref, o_ref):
    x = x_ref[...].astype(jnp.float32)
    # input QuantStub: integer codes with S_IN factored out of the matmul
    #   c in [-128, 127], integer-valued -> exact in bf16 (no activation rounding error)
    c = jnp.clip(jnp.round(x * INV_S_IN) + ZP_IN, QMIN, QMAX) - ZP_IN
    # wrapped module: Linear on the native bf16 MXU path, f32 accumulation
    acc = jnp.dot(c.astype(jnp.bfloat16), w_ref[...], preferred_element_type=jnp.float32)
    y = S_IN * acc + b_ref[...]
    # output QuantStub (fake quantize/dequantize)
    q = jnp.clip(jnp.round(y * INV_S_OUT) + ZP_OUT, QMIN, QMAX)
    o_ref[...] = ((q - ZP_OUT) * S_OUT).astype(o_ref.dtype)


def prepare_linear_params(w, b):
    """One-time (module-init) prep: bf16 weight for the MXU, bias as a (1, F_out) f32 row.
    Hoisted out of the forward so no pad/convert chain runs per call."""
    w_bf16 = jnp.asarray(w, dtype=jnp.bfloat16)
    b_row = jnp.asarray(b, dtype=jnp.float32).reshape(1, -1)
    return w_bf16, b_row


def quantization_wrapper_forward(x, w_bf16, b_row, *, batch_tile=None):
    """x: (B, F_in) f32, w_bf16: (F_in, F_out) bf16 (pre-transposed Linear weight), b_row: (1, F_out) f32."""
    B, F_in = x.shape
    F_in_w, F_out = w_bf16.shape
    assert F_in_w == F_in and b_row.shape == (1, F_out)

    TB = _pick_batch_tile(B) if batch_tile is None else int(batch_tile)
    grid_n = _cdiv(B, TB)      # no batch padding: Pallas masks the partial last block's OOB writes

    cost = pl.CostEstimate(
        flops=2 * B * F_in * F_out + 8 * B * (F_in + F_out),
        transcendentals=0,
        bytes_accessed=x.size * 4 + w_bf16.size * 2 + b_row.size * 4 + B * F_out * 2,
    )

    return pl.pallas_call(
        quant_wrapper_kernel,
        out_shape=jax.ShapeDtypeStruct((B, F_out), jnp.bfloat16),
        grid_spec=pl.GridSpec(
            grid=(grid_n,),
            in_specs=[
                pl.BlockSpec((TB, F_in), lambda i: (i, 0)),          # batch-tiled activations
                pl.BlockSpec((F_in, F_out), lambda i: (0, 0)),       # VMEM-resident weights
                pl.BlockSpec((1, F_out), lambda i: (0, 0)),          # VMEM-resident bias
            ],
            out_specs=pl.BlockSpec((TB, F_out), lambda i: (i, 0)),
        ),
        compiler_params=pltpu.CompilerParams(
            dimension_semantics=("parallel",),       # shard batch tiles across TCs (v7x)
            vmem_limit_bytes=32 * 1024 * 1024,       # tiny working set; safe on v5e/v6e/v7x
        ),
        cost_estimate=cost,
    )(x, w_bf16, b_row)


def reference_forward(x, w, b):
    # pure-JAX reference mirroring the kernel math exactly
    c = jnp.clip(jnp.round(x.astype(jnp.float32) * INV_S_IN) + ZP_IN, QMIN, QMAX) - ZP_IN
    acc = jnp.dot(c.astype(jnp.bfloat16), w.astype(jnp.bfloat16),
                  preferred_element_type=jnp.float32)
    y = S_IN * acc + b.reshape(1, -1)
    q = jnp.clip(jnp.round(y * INV_S_OUT) + ZP_OUT, QMIN, QMAX)
    return ((q - ZP_OUT) * S_OUT).astype(jnp.bfloat16)


if __name__ == "__main__":
    key = jax.random.PRNGKey(0)
    k_x, k_w, k_b = jax.random.split(key, 3)

    # small shapes consistent with the wrapped Linear(32, 32); batch chosen so the batch-tiled
    # grid path (2 tiles of 24 rows, both TensorCores on v7x) is exercised.
    B, F_in, F_out = 48, 32, 32
    x = jax.random.normal(k_x, (B, F_in), dtype=jnp.float32)
    # PyTorch stores Linear weight as (out, in); kept pre-transposed (in, out) for x @ W.
    w = jax.random.normal(k_w, (F_in, F_out), dtype=jnp.float32) * 0.1
    b = jax.random.normal(k_b, (1, F_out), dtype=jnp.float32) * 0.1

    w_bf16, b_row = prepare_linear_params(w, b)   # cached once at "module init"

    out = quantization_wrapper_forward(x, w_bf16, b_row)
    out = jax.block_until_ready(out)

    ref = reference_forward(x, w, b)
    assert out.shape == ref.shape == (B, F_out)

    # Outputs lie on the S_OUT quantization grid (carried in bf16); expect identical results, but
    # allow at most a single-bin boundary flip on a tiny fraction of elements.
    diff = jnp.abs(out.astype(jnp.float32) - ref.astype(jnp.float32))
    max_diff = float(jnp.max(diff))
    mismatch_frac = float(jnp.mean(diff > 1e-6))
    assert max_diff <= S_OUT * 1.05 + 1e-6, f"mismatch vs. pure-JAX reference: max_diff={max_diff}"
    assert mismatch_frac < 0.01, f"too many quant-bin mismatches: {mismatch_frac}"

    print("KERNEL_OK")
</pallas_src>

<mosaic_0001>
module attributes {stable_mosaic.version = 11 : i64} {
  func.func @quant_wrapper_kernel(%arg0: i32, %arg1: memref<24x32xf32, #tpu.memory_space<vmem>>, %arg2: memref<32x32xbf16, #tpu.memory_space<vmem>>, %arg3: memref<1x32xf32, #tpu.memory_space<vmem>>, %arg4: memref<24x32xbf16, #tpu.memory_space<vmem>>) attributes {dimension_semantics = [#tpu.dimension_semantics<parallel>], iteration_bounds = array<i64: 2>, scalar_prefetch = 0 : i64, scratch_operands = 0 : i64, tpu.core_type = #tpu.core_type<tc>, window_params = [{transform_indices = @transform_0, window_bounds = array<i64: 24, 32>}, {pipeline_mode = #tpu.pipeline_mode<synchronous>, transform_indices = @transform_1, window_bounds = array<i64: 32, 32>}, {pipeline_mode = #tpu.pipeline_mode<synchronous>, transform_indices = @transform_2, window_bounds = array<i64: 1, 32>}, {transform_indices = @transform_3, window_bounds = array<i64: 24, 32>}]} {
    %c0 = arith.constant 0 : index
    %c0_0 = arith.constant 0 : index
    %0 = vector.load %arg1[%c0, %c0_0] : memref<24x32xf32, #tpu.memory_space<vmem>>, vector<24x32xf32>
    %cst = arith.constant 5.000000e+01 : f32
    %1 = vector.broadcast %cst : f32 to vector<24x32xf32>
    %2 = arith.mulf %0, %1 : vector<24x32xf32>
    %3 = math.roundeven %2 : vector<24x32xf32>
    %cst_1 = arith.constant 1.280000e+02 : f32
    %4 = vector.broadcast %cst_1 : f32 to vector<24x32xf32>
    %5 = arith.addf %3, %4 : vector<24x32xf32>
    %cst_2 = arith.constant 0.000000e+00 : f32
    %cst_3 = arith.constant 2.550000e+02 : f32
    %6 = vector.broadcast %cst_2 : f32 to vector<24x32xf32>
    %7 = arith.maximumf %6, %5 : vector<24x32xf32>
    %8 = vector.broadcast %cst_3 : f32 to vector<24x32xf32>
    %9 = arith.minimumf %8, %7 : vector<24x32xf32>
    %cst_4 = arith.constant 1.280000e+02 : f32
    %10 = vector.broadcast %cst_4 : f32 to vector<24x32xf32>
    %11 = arith.subf %9, %10 : vector<24x32xf32>
    %12 = arith.truncf %11 : vector<24x32xf32> to vector<24x32xbf16>
    %c0_5 = arith.constant 0 : index
    %c0_6 = arith.constant 0 : index
    %13 = vector.load %arg2[%c0_5, %c0_6] : memref<32x32xbf16, #tpu.memory_space<vmem>>, vector<32x32xbf16>
    %cst_7 = arith.constant dense<0.000000e+00> : vector<24x32xf32>
    %14 = tpu.matmul %12, %13, %cst_7 {dimension_numbers = #tpu.dot_dimension_numbers<[1], [0], [0], [1], [0, 0, 1, 1], [], []>} : vector<24x32xbf16>, vector<32x32xbf16>, vector<24x32xf32> -> vector<24x32xf32>
    %cst_8 = arith.constant 2.000000e-02 : f32
    %15 = vector.broadcast %cst_8 : f32 to vector<24x32xf32>
    %16 = arith.mulf %15, %14 : vector<24x32xf32>
    %c0_9 = arith.constant 0 : index
    %c0_10 = arith.constant 0 : index
    %17 = vector.load %arg3[%c0_9, %c0_10] : memref<1x32xf32, #tpu.memory_space<vmem>>, vector<1x32xf32>
    %18 = vector.broadcast %17 : vector<1x32xf32> to vector<24x32xf32>
    %19 = arith.addf %16, %18 : vector<24x32xf32>
    %cst_11 = arith.constant 2.000000e+01 : f32
    %20 = vector.broadcast %cst_11 : f32 to vector<24x32xf32>
    %21 = arith.mulf %19, %20 : vector<24x32xf32>
    %22 = math.roundeven %21 : vector<24x32xf32>
    %cst_12 = arith.constant 1.280000e+02 : f32
    %23 = vector.broadcast %cst_12 : f32 to vector<24x32xf32>
    %24 = arith.addf %22, %23 : vector<24x32xf32>
    %cst_13 = arith.constant 0.000000e+00 : f32
    %cst_14 = arith.constant 2.550000e+02 : f32
    %25 = vector.broadcast %cst_13 : f32 to vector<24x32xf32>
    %26 = arith.maximumf %25, %24 : vector<24x32xf32>
    %27 = vector.broadcast %cst_14 : f32 to vector<24x32xf32>
    %28 = arith.minimumf %27, %26 : vector<24x32xf32>
    %cst_15 = arith.constant 1.280000e+02 : f32
    %29 = vector.broadcast %cst_15 : f32 to vector<24x32xf32>
    %30 = arith.subf %28, %29 : vector<24x32xf32>
    %cst_16 = arith.constant 5.000000e-02 : f32
    %31 = vector.broadcast %cst_16 : f32 to vector<24x32xf32>
    %32 = arith.mulf %30, %31 : vector<24x32xf32>
    %33 = arith.truncf %32 : vector<24x32xf32> to vector<24x32xbf16>
    %c0_17 = arith.constant 0 : index
    %c0_18 = arith.constant 0 : index
    %34 = vector.load %arg4[%c0_17, %c0_18] : memref<24x32xbf16, #tpu.memory_space<vmem>>, vector<24x32xbf16>
    tpu.vector_store %arg4[%c0_17, %c0_18], %33 {strides = array<i32>} : memref<24x32xbf16, #tpu.memory_space<vmem>>, vector<24x32xbf16>,
    return
  }
  func.func @transform_0(%arg0: i32) -> (i32, i32) {
    %c0_i32 = arith.constant 0 : i32
    %c0_i32_0 = arith.constant 0 : i32
    return %arg0, %c0_i32 : i32, i32
  }
  func.func @transform_1(%arg0: i32) -> (i32, i32) {
    %c0_i32 = arith.constant 0 : i32
    %c0_i32_0 = arith.constant 0 : i32
    %c0_i32_1 = arith.constant 0 : i32
    return %c0_i32, %c0_i32_0 : i32, i32
  }
  func.func @transform_2(%arg0: i32) -> (i32, i32) {
    %c0_i32 = arith.constant 0 : i32
    %c0_i32_0 = arith.constant 0 : i32
    %c0_i32_1 = arith.constant 0 : i32
    return %c0_i32, %c0_i32_0 : i32, i32
  }
  func.func @transform_3(%arg0: i32) -> (i32, i32) {
    %c0_i32 = arith.constant 0 : i32
    %c0_i32_0 = arith.constant 0 : i32
    return %arg0, %c0_i32 : i32, i32
  }
}

</mosaic_0001>

<llo_original>
// kernel: tpu_custom_call.1
$region0: #{tpu_custom_call.1}
  #allocation0 [shape = 'u32[]', space=smem, size = 0x4, offset = 0x4, fixed_abs, tag = 'smem constant byte address 0x4 - core index']
  #allocation1 [shape = 'u32[72,128]{1,0:T(1,128)}', space=vmem, size = 0x9000, scoped, tag = 'internal scratch']
  %s0 = inlined_call_operand.vmem [shape: f32[48,32], index: 0, kind: input, shape index: {}]
  %s1 = inlined_call_operand.vmem [shape: bf16[32,32], index: 1, kind: input, shape index: {}]
  %s2 = inlined_call_operand.vmem [shape: f32[1,32], index: 2, kind: input, shape index: {}]
  %s3 = inlined_call_operand.vmem [shape: bf16[48,32], index: 3, kind: output, shape index: {}]
  %s4 = sld [smem:[#allocation0]]
  $region45: #{tpu_custom_call.1} parent=0
    _
  %s6 = ssub.s32 1, %s4
  %s7 = scalar_select 0, %s6, %s4
  loop: start=0, step=1, limit=4
  $region2: #{tpu_custom_call.1} parent=0 // loop_pre_header
    _
  $region3: #{tpu_custom_call.1} parent=0 // loop_header
    %s9 = sphi 0, %s13
    %p10 = scmp.ge.s32.totalorder %s9, 4
    %s19 = sphi 0, %s21
    %s22 = sphi 0, %s19
    %s23 = sphi 0, %s22
    %s39 = sphi 0, %s23
    %s43 = sphi 0, %s43
    %s45 = sphi 0, %s43
    %s46 = sphi 0, %s45
    %s60 = sphi 0, %s46
    %s64 = sphi 0, %s64
    %s66 = sphi 0, %s64
    %s67 = sphi 0, %s66
    %s81 = sphi 0, %s67
    %s87 = sphi 0, %s89
    %s90 = sphi 0, %s87
    %s91 = sphi 0, %s90
    %s107 = sphi 0, %s91
  $region4: #{tpu_custom_call.1} parent=0 // loop_header_branch
    %12 = sbr.rel (%p10) target = $region8
  $region5: #{tpu_custom_call.1} parent=0 // loop_body
    %s14 = ssub.s32 %s9, 1
    %s15 = ssub.s32 %s9, 2
    %s16 = sadd.s32 %s9, 1
    %s17 = ssub.s32 %s9, %s16
    %p18 = scmp.eq.s32.totalorder %s17, 0
    %s20 = sadd.s32 %s19, 1
    %s21 = scalar_select %p18, %s19, %s20
    %p24 = pneg %p18
    %p25 = scmp.eq.s32.totalorder %s9, 1
    %p26 = por %p24, %p25
    %p27 = scmp.ne.s32.totalorder %s19, %s22
    %p28 = scmp.eq.s32.totalorder %s9, 0
    %p29 = por %p27, %p28
    %p30 = scmp.ne.s32.totalorder %s19, %s22
    %p31 = scmp.eq.s32.totalorder %s14, 1
    %p32 = por %p30, %p31
    %p33 = scmp.ne.s32.totalorder %s22, %s23
    %p34 = scmp.eq.s32.totalorder %s14, 0
    %p35 = por %p33, %p34
    %p36 = scmp.ne.s32.totalorder %s22, %s23
    %p37 = scmp.eq.s32.totalorder %s15, 1
    %p38 = por %p36, %p37
    %p40 = scmp.ne.s32.totalorder %s23, %s39
    %p41 = scmp.eq.s32.totalorder %s15, 0
    %p42 = por %p40, %p41
    %s44 = sadd.s32 %s43, 1
    %p47 = scmp.eq.s32.totalorder %s9, 1
    %p48 = scmp.ne.s32.totalorder %s43, %s45
    %p49 = scmp.eq.s32.totalorder %s9, 0
    %p50 = por %p48, %p49
    %p51 = scmp.ne.s32.totalorder %s43, %s45
    %p52 = scmp.eq.s32.totalorder %s14, 1
    %p53 = por %p51, %p52
    %p54 = scmp.ne.s32.totalorder %s45, %s46
    %p55 = scmp.eq.s32.totalorder %s14, 0
    %p56 = por %p54, %p55
    %p57 = scmp.ne.s32.totalorder %s45, %s46
    %p58 = scmp.eq.s32.totalorder %s15, 1
    %p59 = por %p57, %p58
    %p61 = scmp.ne.s32.totalorder %s46, %s60
    %p62 = scmp.eq.s32.totalorder %s15, 0
    %p63 = por %p61, %p62
    %s65 = sadd.s32 %s64, 1
    %p68 = scmp.eq.s32.totalorder %s9, 1
    %p69 = scmp.ne.s32.totalorder %s64, %s66
    %p70 = scmp.eq.s32.totalorder %s9, 0
    %p71 = por %p69, %p70
    %p72 = scmp.ne.s32.totalorder %s64, %s66
    %p73 = scmp.eq.s32.totalorder %s14, 1
    %p74 = por %p72, %p73
    %p75 = scmp.ne.s32.totalorder %s66, %s67
    %p76 = scmp.eq.s32.totalorder %s14, 0
    %p77 = por %p75, %p76
    %p78 = scmp.ne.s32.totalorder %s66, %s67
    %p79 = scmp.eq.s32.totalorder %s15, 1
    %p80 = por %p78, %p79
    %p82 = scmp.ne.s32.totalorder %s67, %s81
    %p83 = scmp.eq.s32.totalorder %s15, 0
    %p84 = por %p82, %p83
    %s85 = ssub.s32 %s9, %s16
    %p86 = scmp.eq.s32.totalorder %s85, 0
    %s88 = sadd.s32 %s87, 1
    %s89 = scalar_select %p86, %s87, %s88
    %p92 = pneg %p86
    %p93 = scmp.eq.s32.totalorder %s9, 1
    %p94 = por %p92, %p93
    %p95 = scmp.ne.s32.totalorder %s87, %s90
    %p96 = scmp.eq.s32.totalorder %s9, 0
    %p97 = por %p95, %p96
    %p98 = scmp.ne.s32.totalorder %s87, %s90
    %p99 = scmp.eq.s32.totalorder %s14, 1
    %p100 = por %p98, %p99
    %p101 = scmp.ne.s32.totalorder %s90, %s91
    %p102 = scmp.eq.s32.totalorder %s14, 0
    %p103 = por %p101, %p102
    %p104 = scmp.ne.s32.totalorder %s90, %s91
    %p105 = scmp.eq.s32.totalorder %s15, 1
    %p106 = por %p104, %p105
    %p108 = scmp.ne.s32.totalorder %s91, %s107
    %p109 = scmp.eq.s32.totalorder %s15, 0
    %p110 = por %p108, %p109
    %p111 = scmp.le.s32.totalorder 1, %s9
    %p112 = scmp.lt.s32.totalorder %s9, 3
    %p113 = pnand %p111, %p112
    %p114 = pneg %p113
    // Predicated region
    $region9: #{tpu_custom_call.1} parent=5 // pred_check
      _
    $region10: #{tpu_custom_call.1} parent=5 // pred_check_branch
      %116 = sbr.rel (%p113) target = $region12
    $region11: #{tpu_custom_call.1} parent=5 // pred_region
      %s117 = ssub.s32 %s9, 1
      // Predicated region
      $region13: #{tpu_custom_call.1} parent=11 // pred_check
        %p118 = pneg %p56
      $region14: #{tpu_custom_call.1} parent=11 // pred_check_branch
        %120 = sbr.rel (%p118) target = $region16
      $region15: #{tpu_custom_call.1} parent=11 // pred_region
        _
      $region16: #{tpu_custom_call.1} parent=11 // pred_fallthru
        _
      // Predicated region
      $region17: #{tpu_custom_call.1} parent=11 // pred_check
        %p121 = pneg %p77
      $region18: #{tpu_custom_call.1} parent=11 // pred_check_branch
        %123 = sbr.rel (%p121) target = $region20
      $region19: #{tpu_custom_call.1} parent=11 // pred_region
        _
      $region20: #{tpu_custom_call.1} parent=11 // pred_fallthru
        _
    $region12: #{tpu_custom_call.1} parent=5 // pred_fallthru
      _
    %p124 = scmp.lt.s32.totalorder %s9, 2
    // Predicated region
    $region21: #{tpu_custom_call.1} parent=5 // pred_check
      %p125 = pneg %p124
    $region22: #{tpu_custom_call.1} parent=5 // pred_check_branch
      %127 = sbr.rel (%p125) target = $region24
    $region23: #{tpu_custom_call.1} parent=5 // pred_region
      // Predicated region
      $region25: #{tpu_custom_call.1} parent=23 // pred_check
        %p128 = pneg %p29
      $region26: #{tpu_custom_call.1} parent=23 // pred_check_branch
        %130 = sbr.rel (%p128) target = $region28
      $region27: #{tpu_custom_call.1} parent=23 // pred_region
        %s131 = smul.u32 3, %s9
        %p132 = scmp.lt.s32.totalorder %s131, 5
        %s133 = scalar_select %p132, %s131, 5
        %s134 = smul.addr %s133, 8
        %s135 = scalar_lea.vmem %s0, %s134
        %s136 = smul.u32 3, %s9
      $region28: #{tpu_custom_call.1} parent=23 // pred_fallthru
        _
    $region24: #{tpu_custom_call.1} parent=5 // pred_fallthru
      _
    %p137 = scmp.le.s32.totalorder 1, %s9
    %p138 = scmp.lt.s32.totalorder %s9, 3
    %p139 = pnand %p137, %p138
    %p140 = pneg %p139
    // Predicated region
    $region29: #{tpu_custom_call.1} parent=5 // pred_check
      _
    $region30: #{tpu_custom_call.1} parent=5 // pred_check_branch
      %142 = sbr.rel (%p139) target = $region32
    $region31: #{tpu_custom_call.1} parent=5 // pred_region
      %s143 = ssub.s32 %s9, 1
      %s144 = smul.u32 3, %s14
      %p145 = scmp.lt.s32.totalorder %s144, 5
      %s146 = scalar_select %p145, %s144, 5
      %s147 = smul.addr %s146, 8
      %s148 = scalar_lea.vmem %s0, %s147
      %p149 = pneg %p35
      %p150 = pneg %p32
      %p151 = pneg %p56
      %p152 = pneg %p53
      %p153 = pneg %p77
      %p154 = pneg %p74
      %p155 = pneg %p103
      %p156 = pneg %p100
      %s157 = smul.u32 3, %s14
      %p158 = scmp.lt.s32.totalorder %s157, 5
      %s159 = scalar_select %p158, %s157, 5
      %s160 = smul.addr %s159, 4
      %s161 = scalar_lea.vmem %s3, %s160
      %s162 = smul.u32 3, %s14
      %p163 = scmp.lt.s32.totalorder %s162, 5
      %s164 = scalar_select %p163, %s162, 5
      %s165 = smul.addr %s164, 8
      %s166 = scalar_lea.vmem %s0, %s165
      %s167 = smul.u32 3, %s14
      %s168 = smul.u32 3, %s14
      %p169 = scmp.lt.s32.totalorder %s168, 5
      %s170 = scalar_select %p169, %s168, 5
      %s171 = smul.addr %s170, 4
      %s172 = scalar_lea.vmem %s3, %s171
      %s173 = smul.u32 3, %s14
      %v175 = vld [vmem:[%s166] sm:$0xff]
      %v176 = vld [vmem:[%s166 + $0x8] sm:$0xff]
      %v177 = vld [vmem:[%s166 + $0x10] sm:$0xff]
      %v178 = vmul.f32 %v175, 50.0
      %v179 = vmul.f32 %v176, 50.0
      %v180 = vmul.f32 %v177, 50.0
      %v181 = vround.ne.pseudo %v178
      %v182 = vround.ne.pseudo %v179
      %v183 = vround.ne.pseudo %v180
      %v184 = vadd.f32 %v181, 128.0
      %v185 = vadd.f32 %v182, 128.0
      %v186 = vadd.f32 %v183, 128.0
      %v187 = vmax.f32 %v184, 0.0
      %v188 = vmax.f32 %v185, 0.0
      %v189 = vmax.f32 %v186, 0.0
      %v190 = vmin.f32 %v187, 255.0
      %v191 = vmin.f32 %v188, 255.0
      %v192 = vmin.f32 %v189, 255.0
      %v193 = vsub.f32 %v190, 128.0
      %v194 = vsub.f32 %v191, 128.0
      %v195 = vsub.f32 %v192, 128.0
      %v196 = vpack.c.bf16 %v194, %v193
      %v197 = vpack.c.bf16 %v195, %v195
      %v198 = vld [vmem:[%s1] sm:$0xf]
      %v199 = vld [vmem:[%s1 + $0x4] sm:$0xf]
      %v200 = vld [vmem:[%s1 + $0x8] sm:$0xf]
      %v201 = vld [vmem:[%s1 + $0xc] sm:$0xf]
      %v206 = vunpack.c.l.b16 %v198
      %v207 = vunpack.c.l.b16 %v199
      %v208 = vunpack.c.l.b16 %v200
      %v209 = vunpack.c.l.b16 %v201
      %v210 = vpack.c.b16 %v207, %v206
      %v211 = vpack.c.b16 %v209, %v208
      %vm214 = vcmask 261120
      %v216 = vsel %vm214, %v196, 0
      %v219 = vsel %vm214, %v197, 0
      %221 = vmatpush.bf16.msra.mxu0 0
      %222 = vmatpush.bf16.msra.mxu0 0
      %223 = vmatpush.bf16.msra.mxu0 0
      %224 = vmatpush.bf16.msra.mxu0 0
      %225 = vmatpush.bf16.msra.mxu0 0
      %226 = vmatpush.bf16.msra.mxu0 0
      %227 = vmatpush.bf16.msra.mxu0 %v211
      %228 = vmatpush.bf16.msra.mxu0 %v210
      %229 = vmatmul.bf16.gmra.mxu0 %v216
      %v230 = vpop.f32.mrf.mxu0
      %v231 = vadd.f32 0.0, %v230
      %v232 = vpop.f32.mrf.mxu0
      %v233 = vadd.f32 0.0, %v232
      %234 = vmatmul.bf16.gmra.mxu0 %v219
      %v235 = vpop.f32.mrf.mxu0
      %v236 = vadd.f32 0.0, %v235
      %v237 = vpop.f32.mrf.mxu0
      %238 = vdwg.mxu0
      %v239 = vmul.f32 %v231, 0.02
      %v240 = vmul.f32 %v233, 0.02
      %v241 = vmul.f32 %v236, 0.02
      %v242 = vld [vmem:[%s2] sm:$0x1]
      %v244 = vperm.slane %v242, 0
      %v246 = vadd.f32 %v239, %v244
      %v247 = vadd.f32 %v240, %v244
      %v248 = vadd.f32 %v241, %v244
      %v249 = vmul.f32 %v246, 20.0
      %v250 = vmul.f32 %v247, 20.0
      %v251 = vmul.f32 %v248, 20.0
      %v252 = vround.ne.pseudo %v249
      %v253 = vround.ne.pseudo %v250
      %v254 = vround.ne.pseudo %v251
      %v255 = vadd.f32 %v252, 128.0
      %v256 = vadd.f32 %v253, 128.0
      %v257 = vadd.f32 %v254, 128.0
      %v258 = vmax.f32 %v255, 0.0
      %v259 = vmax.f32 %v256, 0.0
      %v260 = vmax.f32 %v257, 0.0
      %v261 = vmin.f32 %v258, 255.0
      %v262 = vmin.f32 %v259, 255.0
      %v263 = vmin.f32 %v260, 255.0
      %v264 = vsub.f32 %v261, 128.0
      %v265 = vsub.f32 %v262, 128.0
      %v266 = vsub.f32 %v263, 128.0
      %v267 = vmul.f32 %v264, 0.05
      %v268 = vmul.f32 %v265, 0.05
      %v269 = vmul.f32 %v266, 0.05
      %v270 = vpack.c.bf16 %v267, %v267
      %v271 = vpack.c.bf16 %v268, %v268
      %v272 = vpack.c.bf16 %v269, %v269
      %vm273 = vcmask 257024
      %274 = vst.msk [vmem:[%s172] sm:$0xf] %vm273, %v270
      %275 = vst.msk [vmem:[%s172 + $0x4] sm:$0xf] %vm273, %v271
      %276 = vst.msk [vmem:[%s172 + $0x8] sm:$0xf] %vm273, %v272
      %s277 = smul.u32 3, %s14
      %p278 = scmp.lt.s32.totalorder %s277, 5
      %s279 = scalar_select %p278, %s277, 5
      %s280 = smul.addr %s279, 4
      %s281 = scalar_lea.vmem %s3, %s280
      // Predicated region
      $region33: #{tpu_custom_call.1} parent=31 // pred_check
        %p282 = pneg %p100
      $region34: #{tpu_custom_call.1} parent=31 // pred_check_branch
        %284 = sbr.rel (%p282) target = $region36
      $region35: #{tpu_custom_call.1} parent=31 // pred_region
        %s285 = smul.u32 3, %s14
      $region36: #{tpu_custom_call.1} parent=31 // pred_fallthru
        _
    $region32: #{tpu_custom_call.1} parent=5 // pred_fallthru
      _
    %p286 = scmp.le.s32.totalorder 2, %s9
    // Predicated region
    $region37: #{tpu_custom_call.1} parent=5 // pred_check
      %p287 = pneg %p286
    $region38: #{tpu_custom_call.1} parent=5 // pred_check_branch
      %289 = sbr.rel (%p287) target = $region40
    $region39: #{tpu_custom_call.1} parent=5 // pred_region
      %s290 = ssub.s32 %s9, 2
      // Predicated region
      $region41: #{tpu_custom_call.1} parent=39 // pred_check
        %p291 = pneg %p106
      $region42: #{tpu_custom_call.1} parent=39 // pred_check_branch
        %293 = sbr.rel (%p291) target = $region44
      $region43: #{tpu_custom_call.1} parent=39 // pred_region
        %s294 = smul.u32 3, %s15
        %p295 = scmp.lt.s32.totalorder %s294, 5
        %s296 = scalar_select %p295, %s294, 5
        %s297 = smul.addr %s296, 4
        %s298 = scalar_lea.vmem %s3, %s297
      $region44: #{tpu_custom_call.1} parent=39 // pred_fallthru
        _
    $region40: #{tpu_custom_call.1} parent=5 // pred_fallthru
      _
  $region6: #{tpu_custom_call.1} parent=0 // loop_footer
    %s13 = sadd.s32 1, %s9
  $region7: #{tpu_custom_call.1} parent=0 // loop_footer_branch
    %8 = sbr.rel target = $region3
  $region8: #{tpu_custom_call.1} parent=0 // loop_exit
    _

</llo_original>
